<compile_context>
chip_gen: v7x
topology: tpu7x:2x2x1
jax: 0.10.0
libtpu: 0.0.40
codegen_flags: <defaults>
</compile_context>

<pallas_src>
import math

import jax
import jax.numpy as jnp
from jax.experimental import pallas as pl
from jax.experimental.pallas import tpu as pltpu


# ---------------------------------------------------------------------------
# Pallas kernel: mean over the segment axis of a (rows, T, Ctile) block.
# ---------------------------------------------------------------------------

def _avg_kernel(x_ref, o_ref):
    # x_ref: (bB, T, Ct)  ->  o_ref: (bB, Ct)
    t = x_ref.shape[1]
    acc = jnp.sum(x_ref[...].astype(jnp.float32), axis=1)   # f32 accumulate
    o_ref[...] = (acc * (1.0 / t)).astype(o_ref.dtype)       # 1/T folds at compile time


# ---------------------------------------------------------------------------
# Wrapper: tiling / padding glue around the kernel.
# ---------------------------------------------------------------------------

_LANE = 128
_MAX_C_TILE = 2048            # lanes per C tile (keeps blocks modest, many grid steps)
_TARGET_BLOCK_BYTES = 2 << 20  # ~2 MiB input blocks -> >85% of HBM roofline regime


def _round_up(x, m):
    return ((x + m - 1) // m) * m


def _consensus_avg_3d(x3):
    """Mean over axis 1 (keepdim) of a (B, T, C) array via one pallas_call."""
    B, T, C = x3.shape
    itemsize = jnp.dtype(x3.dtype).itemsize
    # Minimum sublane granularity for this dtype (f32: 8, bf16: 16, int8: 32).
    mult = max(8, 32 // itemsize)

    # --- choose a lane-dense C tile (multiple of 128) ---------------------
    # Keep even the minimum-row block under the byte target for large T.
    max_ct_for_t = max(_LANE,
                       ((_TARGET_BLOCK_BYTES // (mult * T * itemsize)) // _LANE) * _LANE)
    c_tile = min(_round_up(C, _LANE), _MAX_C_TILE, max_ct_for_t)
    Cp = _round_up(C, c_tile)

    # --- choose how many batch rows per block ------------------------------
    rows = max(1, _TARGET_BLOCK_BYTES // (T * c_tile * itemsize))
    if rows >= B:
        bB, Bp = B, B                      # single full-B block (full-dim exception)
    else:
        bB = max(mult, (rows // mult) * mult)
        Bp = _round_up(B, bB)

    xp = x3
    if (Bp, Cp) != (B, C):
        xp = jnp.pad(x3, ((0, Bp - B), (0, 0), (0, Cp - C)))

    out2d = pl.pallas_call(
        _avg_kernel,
        out_shape=jax.ShapeDtypeStruct((Bp, Cp), x3.dtype),
        grid_spec=pltpu.PrefetchScalarGridSpec(
            num_scalar_prefetch=0,
            grid=(Bp // bB, Cp // c_tile),
            in_specs=[pl.BlockSpec((bB, T, c_tile), lambda i, j: (i, 0, j))],
            # 2-D, lane-dense output slab: unmasked full-lane stores.
            out_specs=pl.BlockSpec((bB, c_tile), lambda i, j: (i, j)),
        ),
        compiler_params=pltpu.CompilerParams(
            dimension_semantics=("parallel", "parallel"),
        ),
    )(xp)

    return out2d[:B, :C].reshape(B, 1, C)


def consensus_forward(x, consensus_type, dim=1):
    """JAX/Pallas equivalent of ConsensusModule.forward (forward pass only)."""
    consensus_type = consensus_type if consensus_type != 'rnn' else 'identity'

    if consensus_type == 'avg':
        dim = dim % x.ndim
        shape = x.shape
        B = math.prod(shape[:dim])
        T = shape[dim]
        C = math.prod(shape[dim + 1:])
        out3 = _consensus_avg_3d(x.reshape(B, T, C))
        return out3.reshape(shape[:dim] + (1,) + shape[dim + 1:])

    elif consensus_type == 'identity':
        # No kernel: a Pallas identity copy would only waste 2x HBM bandwidth.
        return x

    else:
        # Matches the PyTorch module: unknown consensus type -> None.
        return None
    # TODO(synk): backward (gradient broadcast / divide) not implemented; forward only.


# ---------------------------------------------------------------------------
# Demo / correctness check
# ---------------------------------------------------------------------------

if __name__ == "__main__":
    key = jax.random.PRNGKey(0)
    B, T, C = 2, 8, 32          # batch, num_segments, num_classes
    x = jax.random.normal(key, (B, T, C), dtype=jnp.float32)

    # 'avg' consensus
    y_avg = jax.block_until_ready(consensus_forward(x, 'avg', dim=1))
    ref_avg = jnp.mean(x, axis=1, keepdims=True)
    assert y_avg.shape == (B, 1, C)
    assert jnp.allclose(y_avg, ref_avg, atol=1e-5, rtol=1e-5)

    # non-128-multiple trailing size + extra trailing dims (exercises padding + collapse)
    x4 = jax.random.normal(jax.random.PRNGKey(1), (2, 8, 4, 40), dtype=jnp.float32)
    y4 = jax.block_until_ready(consensus_forward(x4, 'avg', dim=1))
    ref4 = jnp.mean(x4, axis=1, keepdims=True)
    assert y4.shape == (2, 1, 4, 40)
    assert jnp.allclose(y4, ref4, atol=1e-5, rtol=1e-5)

    # bf16 input: kernel accumulates in f32
    xb = x.astype(jnp.bfloat16)
    yb = jax.block_until_ready(consensus_forward(xb, 'avg', dim=1))
    refb = jnp.mean(xb.astype(jnp.float32), axis=1, keepdims=True).astype(jnp.bfloat16)
    assert jnp.allclose(yb.astype(jnp.float32), refb.astype(jnp.float32),
                        atol=2e-2, rtol=2e-2)

    # 'identity' and 'rnn' return the input as-is (no kernel, no copy)
    assert consensus_forward(x, 'identity', dim=1) is x
    assert consensus_forward(x, 'rnn', dim=1) is x

    # unknown consensus type -> None (matches PyTorch module)
    assert consensus_forward(x, 'bogus', dim=1) is None

    print("KERNEL_OK")
</pallas_src>

<mosaic_0001>
module attributes {stable_mosaic.version = 11 : i64} {
  func.func @_avg_kernel(%arg0: i32, %arg1: i32, %arg2: memref<2x8x128xf32, #tpu.memory_space<vmem>>, %arg3: memref<2x128xf32, #tpu.memory_space<vmem>>) attributes {dimension_semantics = [#tpu.dimension_semantics<parallel>, #tpu.dimension_semantics<parallel>], iteration_bounds = array<i64: 1, 1>, scalar_prefetch = 0 : i64, scratch_operands = 0 : i64, tpu.core_type = #tpu.core_type<tc>, window_params = [{transform_indices = @transform_0, window_bounds = array<i64: 2, 8, 128>}, {transform_indices = @transform_1, window_bounds = array<i64: 2, 128>}]} {
    %c0 = arith.constant 0 : index
    %c0_0 = arith.constant 0 : index
    %c0_1 = arith.constant 0 : index
    %0 = vector.load %arg2[%c0, %c0_0, %c0_1] : memref<2x8x128xf32, #tpu.memory_space<vmem>>, vector<2x8x128xf32>
    %cst = arith.constant dense<0.000000e+00> : vector<2x128xf32>
    %1 = vector.multi_reduction <add>, %0, %cst [1] : vector<2x8x128xf32> to vector<2x128xf32>
    %cst_2 = arith.constant 1.250000e-01 : f32
    %2 = vector.broadcast %cst_2 : f32 to vector<2x128xf32>
    %3 = arith.mulf %1, %2 : vector<2x128xf32>
    %c0_3 = arith.constant 0 : index
    %c0_4 = arith.constant 0 : index
    %4 = vector.load %arg3[%c0_3, %c0_4] : memref<2x128xf32, #tpu.memory_space<vmem>>, vector<2x128xf32>
    tpu.vector_store %arg3[%c0_3, %c0_4], %3 {strides = array<i32>} : memref<2x128xf32, #tpu.memory_space<vmem>>, vector<2x128xf32>,
    return
  }
  func.func @transform_0(%arg0: i32, %arg1: i32) -> (i32, i32, i32) {
    %c0_i32 = arith.constant 0 : i32
    %c0_i32_0 = arith.constant 0 : i32
    return %arg0, %c0_i32, %arg1 : i32, i32, i32
  }
  func.func @transform_1(%arg0: i32, %arg1: i32) -> (i32, i32) {
    %c0_i32 = arith.constant 0 : i32
    return %arg0, %arg1 : i32, i32
  }
}

</mosaic_0001>

<llo_original>
// kernel: tpu_custom_call.1
$region0: #{tpu_custom_call.1}
  #allocation0 [shape = 'u32[]', space=smem, size = 0x4, offset = 0x4, fixed_abs, tag = 'smem constant byte address 0x4 - core index']
  #allocation1 [shape = 'u32[144,128]{1,0:T(1,128)}', space=vmem, size = 0x12000, scoped, tag = 'internal scratch']
  %s0 = inlined_call_operand.hbm [shape: f32[2,8,128], index: 0, kind: input, shape index: {}]
  %s1 = inlined_call_operand.hbm [shape: f32[2,128], index: 1, kind: output, shape index: {}]
  %s2 = sld [smem:[#allocation0]]
  $region18: #{tpu_custom_call.1} parent=0
    _
  %s4 = ssub.s32 1, %s2
  %s5 = scalar_select 0, %s4, %s2
  $region1: #{tpu_custom_call.1} parent=0
    #allocation2 [shape = 'u8[8192]{0}', space=vmem, size = 0x2000, scoped, tag = 'input window, operand 0, single buffered']
    #allocation3 [shape = 's32[1]{0}', space=sflag, size = 0x4, scoped, tag = 'scoped memory for tpu_custom_call.1']
    #allocation4 [shape = 's32[1]{0}', space=sflag, size = 0x4, scoped, tag = 'scoped memory for tpu_custom_call.1']
    #allocation5 [shape = 'u8[1024]{0}', space=vmem, size = 0x400, scoped, tag = 'output window, operand 0, single buffered']
    %6 = vsyncpa [#allocation3], 0
    %7 = vsyncpa [#allocation4], 0
    // Predicated region
    $region2: #{tpu_custom_call.1} parent=1 // pred_check
      _
    $region3: #{tpu_custom_call.1} parent=1 // pred_check_branch
      %9 = sbr.rel (0) target = $region5
    $region4: #{tpu_custom_call.1} parent=1 // pred_region
      %s11 = ssub.s32 256, 256
      %12 = vsyncadd [#allocation3], %s11
      %s13 = sshll.u32 [#allocation2], 4
      %s14 = int_to_ptr.vmem [resolvable:$true] %s13
      %19 = dma.hbm_to_vmem [thread:$0]  %s0, 256, %s14, [#allocation3], 128, 128, 8
    $region5: #{tpu_custom_call.1} parent=1 // pred_fallthru
      _
    // Predicated region
    $region6: #{tpu_custom_call.1} parent=1 // pred_check
      _
    $region7: #{tpu_custom_call.1} parent=1 // pred_check_branch
      %21 = sbr.rel (0) target = $region9
    $region8: #{tpu_custom_call.1} parent=1 // pred_region
      %22 = dma.done [#allocation3], 256
    $region9: #{tpu_custom_call.1} parent=1 // pred_fallthru
      _
    %v23 = vld [vmem:[#allocation2] sm:$0xff]
    %v24 = vld [vmem:[#allocation2 + $0x8] sm:$0xff]
    %v25 = vrot.slane %v23, 4
    %v26 = vadd.f32 %v23, %v25
    %v27 = vrot.slane %v26, 2
    %v28 = vadd.f32 %v26, %v27
    %v29 = vrot.slane %v28, 1
    %v30 = vadd.f32 %v28, %v29
    %v31 = vrot.slane %v24, 4
    %v32 = vadd.f32 %v24, %v31
    %v33 = vrot.slane %v32, 2
    %v34 = vadd.f32 %v32, %v33
    %v35 = vrot.slane %v34, 1
    %v36 = vadd.f32 %v34, %v35
    %v37 = vmul.f32 %v30, 0.125
    %v38 = vmul.f32 %v36, 0.125
    %vm41 = vcmask 1041409
    %v42 = vsel %vm41, %v38, %v37
    %44 = vst [vmem:[#allocation5] sm:$0x3] %v42
    // Predicated region
    $region10: #{tpu_custom_call.1} parent=1 // pred_check
      _
    $region11: #{tpu_custom_call.1} parent=1 // pred_check_branch
      %46 = sbr.rel (0) target = $region13
    $region12: #{tpu_custom_call.1} parent=1 // pred_region
      %s48 = ssub.s32 32, 32
      %49 = vsyncadd [#allocation4], %s48
      %s51 = sshll.u32 [#allocation5], 4
      %s52 = int_to_ptr.vmem [resolvable:$true] %s51
      %54 = dma.vmem_to_hbm [thread:$0]  %s52, 32, %s1, [#allocation4]
    $region13: #{tpu_custom_call.1} parent=1 // pred_fallthru
      _
    // Predicated region
    $region14: #{tpu_custom_call.1} parent=1 // pred_check
      _
    $region15: #{tpu_custom_call.1} parent=1 // pred_check_branch
      %56 = sbr.rel (0) target = $region17
    $region16: #{tpu_custom_call.1} parent=1 // pred_region
      %57 = dma.done [#allocation4], 32
    $region17: #{tpu_custom_call.1} parent=1 // pred_fallthru
      _
    %58 = vsyncpa [#allocation3], 1
    %59 = vsyncpa [#allocation4], 1

</llo_original>
